<compile_context>
chip_gen: v5e
topology: v5e:2x2
jax: 0.10.0
libtpu: 0.0.40
codegen_flags: <defaults>
</compile_context>

<pallas_src>
import numpy as np
import jax
import jax.numpy as jnp
from jax.experimental import pallas as pl
from jax.experimental.pallas import tpu as pltpu


# ----------------------------------------------------------------------------
# Kernel 1: fused F.normalize(dim=-1) + nn.Linear  (speaker-embedding path)
# ----------------------------------------------------------------------------
def spkr_norm_linear_kernel(x_ref, w_ref, b_ref, o_ref):
    x = x_ref[...].astype(jnp.float32)                          # [B, E]
    # F.normalize(x, p=2, dim=-1, eps=1e-12) == x / max(||x||_2, eps).
    # rsqrt(max(sumsq, eps^2)) == 1 / max(||x||, eps); rsqrt runs on the EUP
    # (its own VLIW slot) and the broadcast multiply replaces a vector divide.
    sumsq = jnp.sum(x * x, axis=-1, keepdims=True)              # [B, 1]
    xn = x * jax.lax.rsqrt(jnp.maximum(sumsq, 1e-24))
    # NOTE: at production E/H on v6e/v7x, cast xn and w to bf16 here (keep
    # preferred_element_type=f32) for full-rate MXU; kept f32 at these tiny,
    # latency-dominated shapes to stay bit-close to the PyTorch reference.
    y = jnp.dot(xn, w_ref[...], preferred_element_type=jnp.float32) + b_ref[...]
    o_ref[...] = y.astype(o_ref.dtype)                          # [B, H]


def spkr_norm_linear(x, w, b):
    B, E = x.shape
    H = w.shape[1]
    return pl.pallas_call(
        spkr_norm_linear_kernel,
        out_shape=jax.ShapeDtypeStruct((B, H), jnp.float32),
        grid=(1,),
        in_specs=[
            pl.BlockSpec((B, E), lambda i: (0, 0)),
            pl.BlockSpec((E, H), lambda i: (0, 0)),
            # (1, H) bias block sublane-pads to 8 rows in VMEM; harmless.
            pl.BlockSpec((1, H), lambda i: (0, 0)),
        ],
        out_specs=pl.BlockSpec((B, H), lambda i: (0, 0)),
        compiler_params=pltpu.CompilerParams(
            dimension_semantics=("arbitrary",)),
    )(x, w, b)


# ----------------------------------------------------------------------------
# Kernel 2: nn.Embedding lookup as a scalar-prefetch DMA row gather.
# Token ids are prefetched into SMEM; the grid iterates over tokens and the
# table BlockSpec's index_map returns (ids[i], 0), so Pallas DMAs exactly one
# [1, H] row from HBM per grid step.  The kernel body is a pure copy; no
# one-hot, no MXU FLOPs, no [N, V] intermediate.
# ----------------------------------------------------------------------------
def embed_row_gather_kernel(ids_ref, row_ref, o_ref):
    del ids_ref  # only consumed by the index_maps
    o_ref[...] = row_ref[...]


def phone_embedding_lookup(idx_flat, table):
    N = idx_flat.shape[0]
    V, H = table.shape
    ids = idx_flat.astype(jnp.int32)

    grid_spec = pltpu.PrefetchScalarGridSpec(
        num_scalar_prefetch=1,
        grid=(N,),  # one token per grid step; independent -> "parallel"
        in_specs=[
            # Clamp keeps an out-of-range id from DMA-reading an arbitrary row.
            pl.BlockSpec(
                (1, H), lambda i, ids_ref: (jnp.clip(ids_ref[i], 0, V - 1), 0)),
        ],
        out_specs=pl.BlockSpec((1, H), lambda i, ids_ref: (i, 0)),
    )
    return pl.pallas_call(
        embed_row_gather_kernel,
        out_shape=jax.ShapeDtypeStruct((N, H), table.dtype),
        grid_spec=grid_spec,
        compiler_params=pltpu.CompilerParams(
            # Token axis shards across both TensorCores on v7x.
            dimension_semantics=("parallel",)),
    )(ids, table)


# ----------------------------------------------------------------------------
# Wav2TTS_infer forward (dense parts), JAX glue around the Pallas kernels.
# ----------------------------------------------------------------------------
class Wav2TTSInferPallas:
    def __init__(self, phoneset, spkr_emb_dim, hidden_size, key):
        self.phoneset = phoneset
        self.phone_to_id = {ph: i for i, ph in enumerate(phoneset)}
        self.pad_idx = self.phone_to_id["<pad>"]
        V = len(phoneset)
        k1, k2 = jax.random.split(key)
        # spkr_linear: PyTorch weight [H, E] -> stored transposed [E, H]
        self.spkr_w = (jax.random.normal(k1, (spkr_emb_dim, hidden_size),
                                         jnp.float32) * 0.02)
        self.spkr_b = jnp.zeros((1, hidden_size), jnp.float32)
        # phone_embedding: [V, H], padding row zeroed (nn.Embedding padding_idx)
        table = jax.random.normal(k2, (V, hidden_size), jnp.float32) * 0.02
        self.phone_table = table.at[self.pad_idx].set(0.0)

    def tokenize(self, phones):
        """Host-side tokenization + padding (dict lookup, no per-token
        list.index).  Intended to run once, outside the device hot path."""
        seqs = []
        for phone in phones:
            ids = [self.phone_to_id[ph] for ph in phone
                   if ph != " " and ph in self.phone_to_id]
            seqs.append(np.asarray(ids, dtype=np.int32))
        maxlen = max(len(s) for s in seqs)
        phone_ids = np.full((len(seqs), maxlen), self.pad_idx, dtype=np.int32)
        phone_masks = np.ones((len(seqs), maxlen), dtype=bool)
        for i, s in enumerate(seqs):
            phone_ids[i, :len(s)] = s
            phone_masks[i, :len(s)] = False
        return phone_ids, phone_masks

    def forward(self, speaker_embeddings, phone_ids, phone_masks):
        # --- speaker path: F.normalize + spkr_linear (fused Pallas kernel) ---
        speaker_embedding = spkr_norm_linear(
            speaker_embeddings, self.spkr_w, self.spkr_b)        # [B, H]

        # --- phone embedding lookup (Pallas DMA row-gather kernel) -----------
        B, L = phone_ids.shape
        phone_emb_flat = phone_embedding_lookup(
            phone_ids.reshape(B * L), self.phone_table)          # [B*L, H]
        phone_embedding = phone_emb_flat.reshape(B, L, -1)       # [B, L, H]

        # TODO(synk): pyannote speaker encoder (extract_spkr_embedding),
        # TTSDecoder.inference_topkp_sampling_batch (autoregressive top-k/p
        # sampling) and the Vocoder encode/decode are external modules with no
        # definitions in this file; they are not translated.
        return speaker_embedding, phone_embedding, phone_masks


# ----------------------------------------------------------------------------
# Pure-JAX reference for correctness checking.
# ----------------------------------------------------------------------------
def reference(speaker_embeddings, phone_ids, spkr_w, spkr_b, table):
    nrm = jnp.sqrt(jnp.sum(speaker_embeddings ** 2, axis=-1, keepdims=True))
    xn = speaker_embeddings / jnp.maximum(nrm, 1e-12)
    spk = xn @ spkr_w + spkr_b
    emb = table[phone_ids]
    return spk, emb


if __name__ == "__main__":
    key = jax.random.PRNGKey(0)
    k_model, k_spk = jax.random.split(key)

    # Small, module-consistent shapes (H lane-dense = 128).
    batch = 2
    spkr_emb_dim = 64          # pyannote embedding dim (small stand-in)
    hidden_size = 128          # hp.hidden_size (lane-dense output)
    phoneset = ["<pad>", "<s>", "</s>", "a", "b", "c", "d", "e",
                "f", "g", "h", "i", "j", "k", "l", "m"]

    model = Wav2TTSInferPallas(phoneset, spkr_emb_dim, hidden_size, k_model)

    # Raw speaker embeddings (stand-in for pyannote output on the input wavs).
    speaker_embeddings = jax.random.normal(
        k_spk, (batch, spkr_emb_dim), jnp.float32)

    # Phone sequences (strings) of unequal length, including a space to filter.
    phones = [
        ["<s>", "h", "e", "l", " ", "l", "</s>"],
        ["<s>", "a", "b", "</s>"],
    ]

    # Tokenize on host (outside the device hot path), then run the kernels.
    phone_ids_np, phone_masks_np = model.tokenize(phones)
    phone_ids = jnp.asarray(phone_ids_np)
    phone_masks = jnp.asarray(phone_masks_np)

    spk_out, phone_emb, masks_out = model.forward(
        speaker_embeddings, phone_ids, phone_masks)
    jax.block_until_ready((spk_out, phone_emb, masks_out))

    # Correctness check against pure-JAX reference (padding uses pad_idx, not
    # a literal 0, so the test stays valid if '<pad>' ever moves).
    ref_spk, ref_emb = reference(speaker_embeddings, phone_ids,
                                 model.spkr_w, model.spkr_b, model.phone_table)

    np.testing.assert_allclose(np.asarray(spk_out), np.asarray(ref_spk),
                               rtol=1e-5, atol=1e-5)
    np.testing.assert_array_equal(np.asarray(phone_emb), np.asarray(ref_emb))
    assert np.array_equal(np.asarray(masks_out), phone_masks_np)

    print("KERNEL_OK")
</pallas_src>

<mosaic_0001>
module attributes {stable_mosaic.version = 11 : i64} {
  func.func @spkr_norm_linear_kernel(%arg0: i32, %arg1: memref<2x64xf32, #tpu.memory_space<vmem>>, %arg2: memref<64x128xf32, #tpu.memory_space<vmem>>, %arg3: memref<1x128xf32, #tpu.memory_space<vmem>>, %arg4: memref<2x128xf32, #tpu.memory_space<vmem>>) attributes {dimension_semantics = [#tpu.dimension_semantics<arbitrary>], iteration_bounds = array<i64: 1>, scalar_prefetch = 0 : i64, scratch_operands = 0 : i64, tpu.core_type = #tpu.core_type<tc>, window_params = [{pipeline_mode = #tpu.pipeline_mode<synchronous>, transform_indices = @transform_0, window_bounds = array<i64: 2, 64>}, {pipeline_mode = #tpu.pipeline_mode<synchronous>, transform_indices = @transform_1, window_bounds = array<i64: 64, 128>}, {pipeline_mode = #tpu.pipeline_mode<synchronous>, transform_indices = @transform_2, window_bounds = array<i64: 1, 128>}, {pipeline_mode = #tpu.pipeline_mode<synchronous>, transform_indices = @transform_3, window_bounds = array<i64: 2, 128>}]} {
    %c0 = arith.constant 0 : index
    %c0_0 = arith.constant 0 : index
    %0 = vector.load %arg1[%c0, %c0_0] : memref<2x64xf32, #tpu.memory_space<vmem>>, vector<2x64xf32>
    %1 = arith.mulf %0, %0 : vector<2x64xf32>
    %cst = arith.constant dense<0.000000e+00> : vector<2xf32>
    %2 = vector.multi_reduction <add>, %1, %cst [1] : vector<2x64xf32> to vector<2xf32>
    %3 = vector.shape_cast %2 : vector<2xf32> to vector<2x1xf32>
    %cst_1 = arith.constant 1.000000e-24 : f32
    %4 = vector.broadcast %cst_1 : f32 to vector<2x1xf32>
    %5 = arith.maximumf %3, %4 : vector<2x1xf32>
    %6 = math.rsqrt %5 : vector<2x1xf32>
    %7 = vector.broadcast %6 : vector<2x1xf32> to vector<2x64xf32>
    %8 = arith.mulf %0, %7 : vector<2x64xf32>
    %c0_2 = arith.constant 0 : index
    %c0_3 = arith.constant 0 : index
    %9 = vector.load %arg2[%c0_2, %c0_3] : memref<64x128xf32, #tpu.memory_space<vmem>>, vector<64x128xf32>
    %cst_4 = arith.constant dense<0.000000e+00> : vector<2x128xf32>
    %10 = tpu.matmul %8, %9, %cst_4 {dimension_numbers = #tpu.dot_dimension_numbers<[1], [0], [0], [1], [0, 0, 1, 1], [], []>} : vector<2x64xf32>, vector<64x128xf32>, vector<2x128xf32> -> vector<2x128xf32>
    %c0_5 = arith.constant 0 : index
    %c0_6 = arith.constant 0 : index
    %11 = vector.load %arg3[%c0_5, %c0_6] : memref<1x128xf32, #tpu.memory_space<vmem>>, vector<1x128xf32>
    %12 = vector.broadcast %11 : vector<1x128xf32> to vector<2x128xf32>
    %13 = arith.addf %10, %12 : vector<2x128xf32>
    %c0_7 = arith.constant 0 : index
    %c0_8 = arith.constant 0 : index
    %14 = vector.load %arg4[%c0_7, %c0_8] : memref<2x128xf32, #tpu.memory_space<vmem>>, vector<2x128xf32>
    tpu.vector_store %arg4[%c0_7, %c0_8], %13 {strides = array<i32>} : memref<2x128xf32, #tpu.memory_space<vmem>>, vector<2x128xf32>,
    return
  }
  func.func @transform_0(%arg0: i32) -> (i32, i32) {
    %c0_i32 = arith.constant 0 : i32
    %c0_i32_0 = arith.constant 0 : i32
    %c0_i32_1 = arith.constant 0 : i32
    return %c0_i32, %c0_i32_0 : i32, i32
  }
  func.func @transform_1(%arg0: i32) -> (i32, i32) {
    %c0_i32 = arith.constant 0 : i32
    %c0_i32_0 = arith.constant 0 : i32
    %c0_i32_1 = arith.constant 0 : i32
    return %c0_i32, %c0_i32_0 : i32, i32
  }
  func.func @transform_2(%arg0: i32) -> (i32, i32) {
    %c0_i32 = arith.constant 0 : i32
    %c0_i32_0 = arith.constant 0 : i32
    %c0_i32_1 = arith.constant 0 : i32
    return %c0_i32, %c0_i32_0 : i32, i32
  }
  func.func @transform_3(%arg0: i32) -> (i32, i32) {
    %c0_i32 = arith.constant 0 : i32
    %c0_i32_0 = arith.constant 0 : i32
    %c0_i32_1 = arith.constant 0 : i32
    return %c0_i32, %c0_i32_0 : i32, i32
  }
}

</mosaic_0001>

<llo_original>
// kernel: tpu_custom_call.1
$region0: #{tpu_custom_call.1}
  #allocation0 [shape = 'u32[]', space=smem, size = 0x4, offset = 0x4, fixed_abs, tag = 'smem constant byte address 0x4 - core index']
  #allocation1 [shape = 'u32[72,128]{1,0:T(1,128)}', space=vmem, size = 0x9000, scoped, tag = 'internal scratch']
  %s0 = inlined_call_operand.hbm [shape: f32[2,64], index: 0, kind: input, shape index: {}]
  %s1 = inlined_call_operand.hbm [shape: f32[64,128], index: 1, kind: input, shape index: {}]
  %s2 = inlined_call_operand.vmem [shape: f32[1,128], index: 2, kind: input, shape index: {}]
  %s3 = inlined_call_operand.hbm [shape: f32[2,128], index: 3, kind: output, shape index: {}]
  %s4 = sld [smem:[#allocation0]]
  $region30: #{tpu_custom_call.1} parent=0
    _
  %s6 = ssub.s32 1, %s4
  %s7 = scalar_select 0, %s6, %s4
  $region1: #{tpu_custom_call.1} parent=0
    #allocation2 [shape = 'u8[1024]{0}', space=vmem, size = 0x400, scoped, tag = 'input window, operand 0, single buffered']
    #allocation3 [shape = 's32[1]{0}', space=sflag, size = 0x4, scoped, tag = 'scoped memory for tpu_custom_call.1']
    #allocation4 [shape = 's32[1]{0}', space=sflag, size = 0x4, scoped, tag = 'scoped memory for tpu_custom_call.1']
    #allocation5 [shape = 'u8[32768]{0}', space=vmem, size = 0x8000, scoped, tag = 'input window, operand 1, single buffered']
    #allocation6 [shape = 's32[1]{0}', space=sflag, size = 0x4, scoped, tag = 'scoped memory for tpu_custom_call.1']
    #allocation7 [shape = 'u8[1024]{0}', space=vmem, size = 0x400, scoped, tag = 'output window, operand 0, single buffered']
    %8 = vsyncpa [#allocation3], 0
    %9 = vsyncpa [#allocation6], 0
    %10 = vsyncpa [#allocation4], 0
    // Predicated region
    $region2: #{tpu_custom_call.1} parent=1 // pred_check
      _
    $region3: #{tpu_custom_call.1} parent=1 // pred_check_branch
      %12 = sbr.rel (0) target = $region5
    $region4: #{tpu_custom_call.1} parent=1 // pred_region
      %14 = vsyncadd [#allocation3], 0
      %s16 = sshll.u32 %s0, 4
      %s17 = int_to_ptr.hbm [resolvable:$true] %s16
      %s18 = sshll.u32 [#allocation2], 4
      %s19 = int_to_ptr.vmem [resolvable:$true] %s18
      %21 = dma.hbm_to_vmem [thread:$0]  %s17, 32, %s19, [#allocation3]
    $region5: #{tpu_custom_call.1} parent=1 // pred_fallthru
      _
    // Predicated region
    $region6: #{tpu_custom_call.1} parent=1 // pred_check
      _
    $region7: #{tpu_custom_call.1} parent=1 // pred_check_branch
      %23 = sbr.rel (0) target = $region9
    $region8: #{tpu_custom_call.1} parent=1 // pred_region
      %25 = vsyncadd [#allocation6], 0
      %s26 = sshll.u32 %s1, 4
      %s27 = int_to_ptr.hbm [resolvable:$true] %s26
      %s28 = sshll.u32 [#allocation5], 4
      %s29 = int_to_ptr.vmem [resolvable:$true] %s28
      %34 = dma.hbm_to_vmem [thread:$0]  %s27, 1024, %s29, [#allocation6], 128, 128, 8
    $region9: #{tpu_custom_call.1} parent=1 // pred_fallthru
      _
    // Predicated region
    $region10: #{tpu_custom_call.1} parent=1 // pred_check
      _
    $region11: #{tpu_custom_call.1} parent=1 // pred_check_branch
      %36 = sbr.rel (0) target = $region13
    $region12: #{tpu_custom_call.1} parent=1 // pred_region
      _
    $region13: #{tpu_custom_call.1} parent=1 // pred_fallthru
      _
    // Predicated region
    $region14: #{tpu_custom_call.1} parent=1 // pred_check
      _
    $region15: #{tpu_custom_call.1} parent=1 // pred_check_branch
      %38 = sbr.rel (0) target = $region17
    $region16: #{tpu_custom_call.1} parent=1 // pred_region
      %40 = dma.done [#allocation3], 32
    $region17: #{tpu_custom_call.1} parent=1 // pred_fallthru
      _
    // Predicated region
    $region18: #{tpu_custom_call.1} parent=1 // pred_check
      _
    $region19: #{tpu_custom_call.1} parent=1 // pred_check_branch
      %42 = sbr.rel (0) target = $region21
    $region20: #{tpu_custom_call.1} parent=1 // pred_region
      %44 = dma.done [#allocation6], 1024
    $region21: #{tpu_custom_call.1} parent=1 // pred_fallthru
      _
    %v45 = vld [vmem:[#allocation2] sm:$0x3]
    %v46 = vmul.f32 %v45, %v45
    %vm47 = vcmask 517120
    %v48 = vsel %vm47, %v46, 0.0
    %49 = vadd.xlane.f32.xlu0 %v48
    %v50 = vpop.xlane.xlu0 %49
    %v51 = vmax.f32 %v50, 1e-24
    %v52 = vrsqrt.pop %v51
    %v53 = vmul.f32 %v52, %v51
    %v54 = vmul.f32 %v53, %v52
    %v55 = vmul.f32 0.5, %v54
    %v56 = vsub.f32 1.5, %v55
    %v57 = vmul.f32 %v52, %v56
    %vm58 = vweird.f32 %v51
    %vm59 = vweird.f32 %v52
    %vm60 = vmor %vm58, %vm59
    %v61 = vsel %vm60, %v52, %v57
    %v62 = vmul.f32 %v45, %v61
    %v63 = vld [vmem:[#allocation5] sm:$0xff]
    %v64 = vld [vmem:[#allocation5 + $0x8] sm:$0xff]
    %v65 = vld [vmem:[#allocation5 + $0x10] sm:$0xff]
    %v66 = vld [vmem:[#allocation5 + $0x18] sm:$0xff]
    %v67 = vld [vmem:[#allocation5 + $0x20] sm:$0xff]
    %v68 = vld [vmem:[#allocation5 + $0x28] sm:$0xff]
    %v69 = vld [vmem:[#allocation5 + $0x30] sm:$0xff]
    %v70 = vld [vmem:[#allocation5 + $0x38] sm:$0xff]
    %v71 = vld [vmem:[%s2] sm:$0x1]
    %v73 = vperm.slane %v71, 0
    %vm75 = vcmask 523264
    %v77 = vsel %vm75, %v62, 0
    %79 = vmatpush.msra.mxu0 0.0
    %80 = vmatpush.msra.mxu0 0.0
    %81 = vmatpush.msra.mxu0 0.0
    %82 = vmatpush.msra.mxu0 0.0
    %83 = vmatpush.msra.mxu0 0.0
    %84 = vmatpush.msra.mxu0 0.0
    %85 = vmatpush.msra.mxu0 0.0
    %86 = vmatpush.msra.mxu0 0.0
    %87 = vmatpush.msra.mxu0 %v70
    %88 = vmatpush.msra.mxu0 %v69
    %89 = vmatpush.msra.mxu0 %v68
    %90 = vmatpush.msra.mxu0 %v67
    %91 = vmatpush.msra.mxu0 %v66
    %92 = vmatpush.msra.mxu0 %v65
    %93 = vmatpush.msra.mxu0 %v64
    %94 = vmatpush.msra.mxu0 %v63
    %95 = vmatmul.f32.gmra.mxu0 %v77
    %v96 = vpop.f32.mrf.mxu0
    %v97 = vadd.f32 %v73, %v96
    %98 = vdwg.mxu0
    %99 = vst [vmem:[#allocation7] sm:$0x3] %v97
    // Predicated region
    $region22: #{tpu_custom_call.1} parent=1 // pred_check
      _
    $region23: #{tpu_custom_call.1} parent=1 // pred_check_branch
      %101 = sbr.rel (0) target = $region25
    $region24: #{tpu_custom_call.1} parent=1 // pred_region
      %103 = vsyncadd [#allocation4], 0
      %s105 = sshll.u32 [#allocation7], 4
      %s106 = int_to_ptr.vmem [resolvable:$true] %s105
      %s107 = sshll.u32 %s3, 4
      %s108 = int_to_ptr.hbm [resolvable:$true] %s107
      %110 = dma.vmem_to_hbm [thread:$0]  %s106, 32, %s108, [#allocation4]
    $region25: #{tpu_custom_call.1} parent=1 // pred_fallthru
      _
    // Predicated region
    $region26: #{tpu_custom_call.1} parent=1 // pred_check
      _
    $region27: #{tpu_custom_call.1} parent=1 // pred_check_branch
      %112 = sbr.rel (0) target = $region29
    $region28: #{tpu_custom_call.1} parent=1 // pred_region
      %114 = dma.done [#allocation4], 32
    $region29: #{tpu_custom_call.1} parent=1 // pred_fallthru
      _
    %115 = vsyncpa [#allocation3], 1
    %116 = vsyncpa [#allocation6], 1
    %117 = vsyncpa [#allocation4], 1

</llo_original>
